<compile_context>
chip_gen: v5e
topology: v5e:2x2
jax: 0.10.0
libtpu: 0.0.40
codegen_flags: <defaults>
</compile_context>

<pallas_src>
import functools
import math

import jax
import jax.numpy as jnp
from jax.experimental import pallas as pl
from jax.experimental.pallas import tpu as pltpu


def _make_divisible(v, divisor, min_value=None):
    if min_value is None:
        min_value = divisor
    new_v = max(min_value, int(v + divisor / 2) // divisor * divisor)
    if new_v < 0.9 * v:
        new_v += divisor
    return new_v


def _se_kernel(x_ref, w1t_ref, b1_ref, w2_ref, b2_ref, o_ref, *, inv_hw):
    # x_ref / o_ref: (Bt, C, HW) block for the current batch tile.

    # ---- squeeze: global average pool, f32 accumulation -> (Bt, C, 1) ----
    pooled = jnp.sum(x_ref[...].astype(jnp.float32), axis=-1, keepdims=True) * inv_hw

    # ---- excite: tiny MLP on VPU/XLU (no M=1 MXU matmul) ----
    # fc1: z1[b, h] = sum_c w1t[c, h] * pooled[b, c]      -> (Bt, 1, hidden)
    z1 = jnp.sum(w1t_ref[...] * pooled, axis=1, keepdims=True) + b1_ref[...]
    z1 = jnp.maximum(z1, 0.0)
    # fc2: z2[b, c] = sum_h w2[c, h] * z1[b, h]           -> (Bt, C, 1)
    z2 = jnp.sum(w2_ref[...] * z1, axis=-1, keepdims=True) + b2_ref[...]
    # h_sigmoid(t) = relu6(t + 3) / 6
    gate = jnp.clip(z2 + 3.0, 0.0, 6.0) * (1.0 / 6.0)          # (Bt, C, 1) f32

    # ---- scale: re-read x, multiply in the input dtype ----
    o_ref[...] = x_ref[...] * gate.astype(o_ref.dtype)


def _padded_tile_bytes(rows, cols, itemsize):
    """Conservative VMEM footprint of one (rows, cols) tile (sublane/lane padded)."""
    sub = max(8, 32 // itemsize)                  # f32: 8, bf16: 16, int8: 32
    return (-(-rows // sub) * sub) * (-(-cols // 128) * 128) * itemsize


def _vmem_budget_bytes():
    """Usable VMEM budget (generation-aware; v7x has only 64 MiB per TC)."""
    try:
        cap = int(pltpu.get_tpu_info().vmem_capacity_bytes)
    except Exception:
        cap = 64 << 20                            # conservative default (v7x)
    return max(24 << 20, min(cap - (8 << 20), int(cap * 0.85)))


def _choose_bt(B, per_b_block_bytes, weights_bytes, budget):
    """Largest divisor of B with ~<=4 MiB blocks, >=2 grid steps (megacore),
    and 2x-in + 2x-out double-buffered footprint under the VMEM budget."""
    target = 4 << 20
    best = 1
    for d in range(1, B + 1):
        if B % d:
            continue
        if B >= 2 and B // d < 2:
            continue                              # keep both v7x TCs busy
        if 4 * d * per_b_block_bytes + weights_bytes > budget:
            continue
        if d * per_b_block_bytes <= target:
            best = d
    return best


@jax.jit
def se_layer(x, w1, b1, w2, b2):
    """x: (B, C, H, W); w1: (hidden, C); b1: (hidden,); w2: (C, hidden); b2: (C,)."""
    B, C, H, W = x.shape
    hidden = w1.shape[0]
    HW = H * W
    itemsize = x.dtype.itemsize

    # (B, C, HW) view; no pad / slice.  Full-extent C/HW block dims are legal,
    # and in-kernel masked stores are far cheaper than extra HBM round-trips.
    x_flat = x.reshape(B, C, HW)

    # Pre-arranged fp32 weights for the in-kernel MLP.
    w1t = w1.T.astype(jnp.float32)                    # (C, hidden)
    b1r = b1.reshape(1, hidden).astype(jnp.float32)   # (1, hidden)
    w2m = w2.astype(jnp.float32)                      # (C, hidden)
    b2r = b2.reshape(C, 1).astype(jnp.float32)        # (C, 1)

    # VMEM accounting: weights/biases are lane-padded and double-buffered.
    weights_bytes = 2 * (2 * _padded_tile_bytes(C, hidden, 4)
                         + _padded_tile_bytes(1, hidden, 4)
                         + _padded_tile_bytes(C, 1, 4))
    per_b_block = _padded_tile_bytes(C, HW, itemsize)
    budget = _vmem_budget_bytes()

    Bt = _choose_bt(B, per_b_block, weights_bytes, budget)

    needed = 4 * Bt * per_b_block + weights_bytes
    vmem_bytes = int(min(budget, max(needed + (4 << 20), 32 << 20)))

    kernel = functools.partial(_se_kernel, inv_hw=1.0 / HW)

    # Advisory cost estimate so XLA schedules neighbors around this
    # memory-bound call.
    cost = pl.CostEstimate(
        flops=2 * B * C * HW + 4 * B * C * hidden,
        transcendentals=0,
        bytes_accessed=2 * B * C * HW * itemsize + (2 * C * hidden + hidden + C) * 4,
    )

    out = pl.pallas_call(
        kernel,
        out_shape=jax.ShapeDtypeStruct((B, C, HW), x.dtype),
        grid_spec=pltpu.PrefetchScalarGridSpec(
            num_scalar_prefetch=0,
            grid=(B // Bt,),
            in_specs=[
                pl.BlockSpec((Bt, C, HW), lambda b: (b, 0, 0)),
                pl.BlockSpec((C, hidden), lambda b: (0, 0)),
                pl.BlockSpec((1, hidden), lambda b: (0, 0)),
                pl.BlockSpec((C, hidden), lambda b: (0, 0)),
                pl.BlockSpec((C, 1), lambda b: (0, 0)),
            ],
            out_specs=pl.BlockSpec((Bt, C, HW), lambda b: (b, 0, 0)),
        ),
        compiler_params=pltpu.CompilerParams(
            dimension_semantics=("parallel",),
            vmem_limit_bytes=vmem_bytes,
        ),
        cost_estimate=cost,
    )(x_flat, w1t, b1r, w2m, b2r)

    return out.reshape(B, C, H, W)


def se_layer_ref(x, w1, b1, w2, b2):
    """Pure-JAX reference matching the PyTorch forward (gate computed in f32)."""
    y = jnp.mean(x.astype(jnp.float32), axis=(2, 3))           # (B, C)
    y = jnp.maximum(y @ w1.T.astype(jnp.float32) + b1, 0.0)    # (B, hidden)
    y = y @ w2.T.astype(jnp.float32) + b2                      # (B, C)
    y = jnp.clip(y + 3.0, 0.0, 6.0) / 6.0                      # h_sigmoid
    return x * y[:, :, None, None].astype(x.dtype)


if __name__ == "__main__":
    key = jax.random.PRNGKey(0)
    B, C, H, W = 2, 4, 16, 16
    reduction = 4
    hidden = _make_divisible(C // reduction, 8)        # -> 8

    kx, kw1, kb1, kw2, kb2 = jax.random.split(key, 5)
    x = jax.random.normal(kx, (B, C, H, W), dtype=jnp.float32)

    # Deterministic "Linear"-style init (uniform in +-1/sqrt(fan_in)).
    lim1 = 1.0 / math.sqrt(C)
    w1 = jax.random.uniform(kw1, (hidden, C), minval=-lim1, maxval=lim1, dtype=jnp.float32)
    b1 = jax.random.uniform(kb1, (hidden,), minval=-lim1, maxval=lim1, dtype=jnp.float32)
    lim2 = 1.0 / math.sqrt(hidden)
    w2 = jax.random.uniform(kw2, (C, hidden), minval=-lim2, maxval=lim2, dtype=jnp.float32)
    b2 = jax.random.uniform(kb2, (C,), minval=-lim2, maxval=lim2, dtype=jnp.float32)

    # f32 check.
    out = jax.block_until_ready(se_layer(x, w1, b1, w2, b2))
    ref = se_layer_ref(x, w1, b1, w2, b2)
    assert out.shape == (B, C, H, W)
    assert jnp.allclose(out, ref, atol=1e-5, rtol=1e-5), "f32 mismatch vs reference"

    # bf16 check: the gate is intentionally cast to the input dtype before the
    # scale (keeps the big multiply in bf16), so use a looser tolerance.
    x_bf16 = x.astype(jnp.bfloat16)
    out_bf = jax.block_until_ready(se_layer(x_bf16, w1, b1, w2, b2))
    ref_bf = se_layer_ref(x_bf16.astype(jnp.float32), w1, b1, w2, b2)
    assert out_bf.dtype == jnp.bfloat16
    assert jnp.allclose(out_bf.astype(jnp.float32), ref_bf, atol=5e-2, rtol=5e-2), \
        "bf16 mismatch vs reference"

    print("KERNEL_OK")
</pallas_src>

<mosaic_0001>
module attributes {stable_mosaic.version = 11 : i64} {
  func.func @_se_kernel(%arg0: i32, %arg1: memref<1x4x256xf32, #tpu.memory_space<vmem>>, %arg2: memref<4x8xf32, #tpu.memory_space<vmem>>, %arg3: memref<1x8xf32, #tpu.memory_space<vmem>>, %arg4: memref<4x8xf32, #tpu.memory_space<vmem>>, %arg5: memref<4x1xf32, #tpu.memory_space<vmem>>, %arg6: memref<1x4x256xf32, #tpu.memory_space<vmem>>) attributes {dimension_semantics = [#tpu.dimension_semantics<parallel>], iteration_bounds = array<i64: 2>, scalar_prefetch = 0 : i64, scratch_operands = 0 : i64, tpu.core_type = #tpu.core_type<tc>, window_params = [{transform_indices = @transform_0, window_bounds = array<i64: 1, 4, 256>}, {pipeline_mode = #tpu.pipeline_mode<synchronous>, transform_indices = @transform_1, window_bounds = array<i64: 4, 8>}, {pipeline_mode = #tpu.pipeline_mode<synchronous>, transform_indices = @transform_2, window_bounds = array<i64: 1, 8>}, {pipeline_mode = #tpu.pipeline_mode<synchronous>, transform_indices = @transform_3, window_bounds = array<i64: 4, 8>}, {pipeline_mode = #tpu.pipeline_mode<synchronous>, transform_indices = @transform_4, window_bounds = array<i64: 4, 1>}, {transform_indices = @transform_5, window_bounds = array<i64: 1, 4, 256>}]} {
    %c0 = arith.constant 0 : index
    %c0_0 = arith.constant 0 : index
    %c0_1 = arith.constant 0 : index
    %0 = vector.load %arg1[%c0, %c0_0, %c0_1] : memref<1x4x256xf32, #tpu.memory_space<vmem>>, vector<1x4x256xf32>
    %cst = arith.constant dense<0.000000e+00> : vector<1x4xf32>
    %1 = vector.multi_reduction <add>, %0, %cst [2] : vector<1x4x256xf32> to vector<1x4xf32>
    %2 = vector.shape_cast %1 : vector<1x4xf32> to vector<1x4x1xf32>
    %cst_2 = arith.constant 3.906250e-03 : f32
    %3 = vector.broadcast %cst_2 : f32 to vector<1x4x1xf32>
    %4 = arith.mulf %2, %3 : vector<1x4x1xf32>
    %c0_3 = arith.constant 0 : index
    %c0_4 = arith.constant 0 : index
    %5 = vector.load %arg2[%c0_3, %c0_4] : memref<4x8xf32, #tpu.memory_space<vmem>>, vector<4x8xf32>
    %6 = vector.shape_cast %5 : vector<4x8xf32> to vector<1x4x8xf32>
    %7 = vector.broadcast %4 : vector<1x4x1xf32> to vector<1x4x8xf32>
    %8 = arith.mulf %6, %7 : vector<1x4x8xf32>
    %cst_5 = arith.constant dense<0.000000e+00> : vector<1x8xf32>
    %9 = vector.multi_reduction <add>, %8, %cst_5 [1] : vector<1x4x8xf32> to vector<1x8xf32>
    %10 = vector.shape_cast %9 : vector<1x8xf32> to vector<1x1x8xf32>
    %c0_6 = arith.constant 0 : index
    %c0_7 = arith.constant 0 : index
    %11 = vector.load %arg3[%c0_6, %c0_7] : memref<1x8xf32, #tpu.memory_space<vmem>>, vector<1x8xf32>
    %12 = vector.shape_cast %11 : vector<1x8xf32> to vector<1x1x8xf32>
    %13 = arith.addf %10, %12 : vector<1x1x8xf32>
    %cst_8 = arith.constant 0.000000e+00 : f32
    %14 = vector.broadcast %cst_8 : f32 to vector<1x1x8xf32>
    %15 = arith.maximumf %13, %14 : vector<1x1x8xf32>
    %c0_9 = arith.constant 0 : index
    %c0_10 = arith.constant 0 : index
    %16 = vector.load %arg4[%c0_9, %c0_10] : memref<4x8xf32, #tpu.memory_space<vmem>>, vector<4x8xf32>
    %17 = vector.shape_cast %16 : vector<4x8xf32> to vector<1x4x8xf32>
    %18 = vector.broadcast %15 : vector<1x1x8xf32> to vector<1x4x8xf32>
    %19 = arith.mulf %17, %18 : vector<1x4x8xf32>
    %cst_11 = arith.constant dense<0.000000e+00> : vector<1x4xf32>
    %20 = vector.multi_reduction <add>, %19, %cst_11 [2] : vector<1x4x8xf32> to vector<1x4xf32>
    %21 = vector.shape_cast %20 : vector<1x4xf32> to vector<1x4x1xf32>
    %c0_12 = arith.constant 0 : index
    %c0_13 = arith.constant 0 : index
    %22 = vector.load %arg5[%c0_12, %c0_13] : memref<4x1xf32, #tpu.memory_space<vmem>>, vector<4x1xf32>
    %23 = vector.shape_cast %22 : vector<4x1xf32> to vector<1x4x1xf32>
    %24 = arith.addf %21, %23 : vector<1x4x1xf32>
    %cst_14 = arith.constant 3.000000e+00 : f32
    %25 = vector.broadcast %cst_14 : f32 to vector<1x4x1xf32>
    %26 = arith.addf %24, %25 : vector<1x4x1xf32>
    %cst_15 = arith.constant 0.000000e+00 : f32
    %cst_16 = arith.constant 6.000000e+00 : f32
    %27 = vector.broadcast %cst_15 : f32 to vector<1x4x1xf32>
    %28 = arith.maximumf %27, %26 : vector<1x4x1xf32>
    %29 = vector.broadcast %cst_16 : f32 to vector<1x4x1xf32>
    %30 = arith.minimumf %29, %28 : vector<1x4x1xf32>
    %cst_17 = arith.constant 0.166666672 : f32
    %31 = vector.broadcast %cst_17 : f32 to vector<1x4x1xf32>
    %32 = arith.mulf %30, %31 : vector<1x4x1xf32>
    %c0_18 = arith.constant 0 : index
    %c0_19 = arith.constant 0 : index
    %c0_20 = arith.constant 0 : index
    %33 = vector.load %arg1[%c0_18, %c0_19, %c0_20] : memref<1x4x256xf32, #tpu.memory_space<vmem>>, vector<1x4x256xf32>
    %34 = vector.broadcast %32 : vector<1x4x1xf32> to vector<1x4x256xf32>
    %35 = arith.mulf %33, %34 : vector<1x4x256xf32>
    %c0_21 = arith.constant 0 : index
    %c0_22 = arith.constant 0 : index
    %c0_23 = arith.constant 0 : index
    %36 = vector.load %arg6[%c0_21, %c0_22, %c0_23] : memref<1x4x256xf32, #tpu.memory_space<vmem>>, vector<1x4x256xf32>
    tpu.vector_store %arg6[%c0_21, %c0_22, %c0_23], %35 {strides = array<i32>} : memref<1x4x256xf32, #tpu.memory_space<vmem>>, vector<1x4x256xf32>,
    return
  }
  func.func @transform_0(%arg0: i32) -> (i32, i32, i32) {
    %c0_i32 = arith.constant 0 : i32
    %c0_i32_0 = arith.constant 0 : i32
    %c0_i32_1 = arith.constant 0 : i32
    return %arg0, %c0_i32, %c0_i32_0 : i32, i32, i32
  }
  func.func @transform_1(%arg0: i32) -> (i32, i32) {
    %c0_i32 = arith.constant 0 : i32
    %c0_i32_0 = arith.constant 0 : i32
    %c0_i32_1 = arith.constant 0 : i32
    return %c0_i32, %c0_i32_0 : i32, i32
  }
  func.func @transform_2(%arg0: i32) -> (i32, i32) {
    %c0_i32 = arith.constant 0 : i32
    %c0_i32_0 = arith.constant 0 : i32
    %c0_i32_1 = arith.constant 0 : i32
    return %c0_i32, %c0_i32_0 : i32, i32
  }
  func.func @transform_3(%arg0: i32) -> (i32, i32) {
    %c0_i32 = arith.constant 0 : i32
    %c0_i32_0 = arith.constant 0 : i32
    %c0_i32_1 = arith.constant 0 : i32
    return %c0_i32, %c0_i32_0 : i32, i32
  }
  func.func @transform_4(%arg0: i32) -> (i32, i32) {
    %c0_i32 = arith.constant 0 : i32
    %c0_i32_0 = arith.constant 0 : i32
    %c0_i32_1 = arith.constant 0 : i32
    return %c0_i32, %c0_i32_0 : i32, i32
  }
  func.func @transform_5(%arg0: i32) -> (i32, i32, i32) {
    %c0_i32 = arith.constant 0 : i32
    %c0_i32_0 = arith.constant 0 : i32
    %c0_i32_1 = arith.constant 0 : i32
    return %arg0, %c0_i32, %c0_i32_0 : i32, i32, i32
  }
}

</mosaic_0001>

<llo_original>
// kernel: se_layer.1
$region0: #{se_layer.1}
  #allocation0 [shape = 'u32[]', space=smem, size = 0x4, offset = 0x4, fixed_abs, tag = 'smem constant byte address 0x4 - core index']
  #allocation1 [shape = 'u32[72,128]{1,0:T(1,128)}', space=vmem, size = 0x9000, scoped, tag = 'internal scratch']
  %s0 = inlined_call_operand.vmem [shape: f32[2,4,256], index: 0, kind: input, shape index: {}]
  %s1 = inlined_call_operand.vmem [shape: f32[4,8], index: 1, kind: input, shape index: {}]
  %s2 = inlined_call_operand.vmem [shape: f32[1,8], index: 2, kind: input, shape index: {}]
  %s3 = inlined_call_operand.vmem [shape: f32[4,8], index: 3, kind: input, shape index: {}]
  %s4 = inlined_call_operand.vmem [shape: f32[4,1], index: 4, kind: input, shape index: {}]
  %s5 = inlined_call_operand.vmem [shape: f32[2,4,256], index: 5, kind: output, shape index: {}]
  %s6 = sld [smem:[#allocation0]]
  $region53: #{se_layer.1} parent=0
    _
  %s8 = ssub.s32 1, %s6
  %s9 = scalar_select 0, %s8, %s6
  loop: start=0, step=1, limit=4
  $region2: #{se_layer.1} parent=0 // loop_pre_header
    _
  $region3: #{se_layer.1} parent=0 // loop_header
    %s11 = sphi 0, %s15
    %p12 = scmp.ge.s32.totalorder %s11, 4
    %s21 = sphi 0, %s23
    %s24 = sphi 0, %s21
    %s25 = sphi 0, %s24
    %s41 = sphi 0, %s25
    %s45 = sphi 0, %s45
    %s47 = sphi 0, %s45
    %s48 = sphi 0, %s47
    %s62 = sphi 0, %s48
    %s66 = sphi 0, %s66
    %s68 = sphi 0, %s66
    %s69 = sphi 0, %s68
    %s83 = sphi 0, %s69
    %s87 = sphi 0, %s87
    %s89 = sphi 0, %s87
    %s90 = sphi 0, %s89
    %s104 = sphi 0, %s90
    %s108 = sphi 0, %s108
    %s110 = sphi 0, %s108
    %s111 = sphi 0, %s110
    %s125 = sphi 0, %s111
    %s131 = sphi 0, %s133
    %s134 = sphi 0, %s131
    %s135 = sphi 0, %s134
    %s151 = sphi 0, %s135
  $region4: #{se_layer.1} parent=0 // loop_header_branch
    %14 = sbr.rel (%p12) target = $region8
  $region5: #{se_layer.1} parent=0 // loop_body
    %s16 = ssub.s32 %s11, 1
    %s17 = ssub.s32 %s11, 2
    %s18 = sadd.s32 %s11, 1
    %s19 = ssub.s32 %s11, %s18
    %p20 = scmp.eq.s32.totalorder %s19, 0
    %s22 = sadd.s32 %s21, 1
    %s23 = scalar_select %p20, %s21, %s22
    %p26 = pneg %p20
    %p27 = scmp.eq.s32.totalorder %s11, 1
    %p28 = por %p26, %p27
    %p29 = scmp.ne.s32.totalorder %s21, %s24
    %p30 = scmp.eq.s32.totalorder %s11, 0
    %p31 = por %p29, %p30
    %p32 = scmp.ne.s32.totalorder %s21, %s24
    %p33 = scmp.eq.s32.totalorder %s16, 1
    %p34 = por %p32, %p33
    %p35 = scmp.ne.s32.totalorder %s24, %s25
    %p36 = scmp.eq.s32.totalorder %s16, 0
    %p37 = por %p35, %p36
    %p38 = scmp.ne.s32.totalorder %s24, %s25
    %p39 = scmp.eq.s32.totalorder %s17, 1
    %p40 = por %p38, %p39
    %p42 = scmp.ne.s32.totalorder %s25, %s41
    %p43 = scmp.eq.s32.totalorder %s17, 0
    %p44 = por %p42, %p43
    %s46 = sadd.s32 %s45, 1
    %p49 = scmp.eq.s32.totalorder %s11, 1
    %p50 = scmp.ne.s32.totalorder %s45, %s47
    %p51 = scmp.eq.s32.totalorder %s11, 0
    %p52 = por %p50, %p51
    %p53 = scmp.ne.s32.totalorder %s45, %s47
    %p54 = scmp.eq.s32.totalorder %s16, 1
    %p55 = por %p53, %p54
    %p56 = scmp.ne.s32.totalorder %s47, %s48
    %p57 = scmp.eq.s32.totalorder %s16, 0
    %p58 = por %p56, %p57
    %p59 = scmp.ne.s32.totalorder %s47, %s48
    %p60 = scmp.eq.s32.totalorder %s17, 1
    %p61 = por %p59, %p60
    %p63 = scmp.ne.s32.totalorder %s48, %s62
    %p64 = scmp.eq.s32.totalorder %s17, 0
    %p65 = por %p63, %p64
    %s67 = sadd.s32 %s66, 1
    %p70 = scmp.eq.s32.totalorder %s11, 1
    %p71 = scmp.ne.s32.totalorder %s66, %s68
    %p72 = scmp.eq.s32.totalorder %s11, 0
    %p73 = por %p71, %p72
    %p74 = scmp.ne.s32.totalorder %s66, %s68
    %p75 = scmp.eq.s32.totalorder %s16, 1
    %p76 = por %p74, %p75
    %p77 = scmp.ne.s32.totalorder %s68, %s69
    %p78 = scmp.eq.s32.totalorder %s16, 0
    %p79 = por %p77, %p78
    %p80 = scmp.ne.s32.totalorder %s68, %s69
    %p81 = scmp.eq.s32.totalorder %s17, 1
    %p82 = por %p80, %p81
    %p84 = scmp.ne.s32.totalorder %s69, %s83
    %p85 = scmp.eq.s32.totalorder %s17, 0
    %p86 = por %p84, %p85
    %s88 = sadd.s32 %s87, 1
    %p91 = scmp.eq.s32.totalorder %s11, 1
    %p92 = scmp.ne.s32.totalorder %s87, %s89
    %p93 = scmp.eq.s32.totalorder %s11, 0
    %p94 = por %p92, %p93
    %p95 = scmp.ne.s32.totalorder %s87, %s89
    %p96 = scmp.eq.s32.totalorder %s16, 1
    %p97 = por %p95, %p96
    %p98 = scmp.ne.s32.totalorder %s89, %s90
    %p99 = scmp.eq.s32.totalorder %s16, 0
    %p100 = por %p98, %p99
    %p101 = scmp.ne.s32.totalorder %s89, %s90
    %p102 = scmp.eq.s32.totalorder %s17, 1
    %p103 = por %p101, %p102
    %p105 = scmp.ne.s32.totalorder %s90, %s104
    %p106 = scmp.eq.s32.totalorder %s17, 0
    %p107 = por %p105, %p106
    %s109 = sadd.s32 %s108, 1
    %p112 = scmp.eq.s32.totalorder %s11, 1
    %p113 = scmp.ne.s32.totalorder %s108, %s110
    %p114 = scmp.eq.s32.totalorder %s11, 0
    %p115 = por %p113, %p114
    %p116 = scmp.ne.s32.totalorder %s108, %s110
    %p117 = scmp.eq.s32.totalorder %s16, 1
    %p118 = por %p116, %p117
    %p119 = scmp.ne.s32.totalorder %s110, %s111
    %p120 = scmp.eq.s32.totalorder %s16, 0
    %p121 = por %p119, %p120
    %p122 = scmp.ne.s32.totalorder %s110, %s111
    %p123 = scmp.eq.s32.totalorder %s17, 1
    %p124 = por %p122, %p123
    %p126 = scmp.ne.s32.totalorder %s111, %s125
    %p127 = scmp.eq.s32.totalorder %s17, 0
    %p128 = por %p126, %p127
    %s129 = ssub.s32 %s11, %s18
    %p130 = scmp.eq.s32.totalorder %s129, 0
    %s132 = sadd.s32 %s131, 1
    %s133 = scalar_select %p130, %s131, %s132
    %p136 = pneg %p130
    %p137 = scmp.eq.s32.totalorder %s11, 1
    %p138 = por %p136, %p137
    %p139 = scmp.ne.s32.totalorder %s131, %s134
    %p140 = scmp.eq.s32.totalorder %s11, 0
    %p141 = por %p139, %p140
    %p142 = scmp.ne.s32.totalorder %s131, %s134
    %p143 = scmp.eq.s32.totalorder %s16, 1
    %p144 = por %p142, %p143
    %p145 = scmp.ne.s32.totalorder %s134, %s135
    %p146 = scmp.eq.s32.totalorder %s16, 0
    %p147 = por %p145, %p146
    %p148 = scmp.ne.s32.totalorder %s134, %s135
    %p149 = scmp.eq.s32.totalorder %s17, 1
    %p150 = por %p148, %p149
    %p152 = scmp.ne.s32.totalorder %s135, %s151
    %p153 = scmp.eq.s32.totalorder %s17, 0
    %p154 = por %p152, %p153
    %p155 = scmp.le.s32.totalorder 1, %s11
    %p156 = scmp.lt.s32.totalorder %s11, 3
    %p157 = pnand %p155, %p156
    %p158 = pneg %p157
    // Predicated region
    $region9: #{se_layer.1} parent=5 // pred_check
      _
    $region10: #{se_layer.1} parent=5 // pred_check_branch
      %160 = sbr.rel (%p157) target = $region12
    $region11: #{se_layer.1} parent=5 // pred_region
      %s161 = ssub.s32 %s11, 1
      // Predicated region
      $region13: #{se_layer.1} parent=11 // pred_check
        %p162 = pneg %p58
      $region14: #{se_layer.1} parent=11 // pred_check_branch
        %164 = sbr.rel (%p162) target = $region16
      $region15: #{se_layer.1} parent=11 // pred_region
        _
      $region16: #{se_layer.1} parent=11 // pred_fallthru
        _
      // Predicated region
      $region17: #{se_layer.1} parent=11 // pred_check
        %p165 = pneg %p79
      $region18: #{se_layer.1} parent=11 // pred_check_branch
        %167 = sbr.rel (%p165) target = $region20
      $region19: #{se_layer.1} parent=11 // pred_region
        _
      $region20: #{se_layer.1} parent=11 // pred_fallthru
        _
      // Predicated region
      $region21: #{se_layer.1} parent=11 // pred_check
        %p168 = pneg %p100
      $region22: #{se_layer.1} parent=11 // pred_check_branch
        %170 = sbr.rel (%p168) target = $region24
      $region23: #{se_layer.1} parent=11 // pred_region
        _
      $region24: #{se_layer.1} parent=11 // pred_fallthru
        _
      // Predicated region
      $region25: #{se_layer.1} parent=11 // pred_check
        %p171 = pneg %p121
      $region26: #{se_layer.1} parent=11 // pred_check_branch
        %173 = sbr.rel (%p171) target = $region28
      $region27: #{se_layer.1} parent=11 // pred_region
        _
      $region28: #{se_layer.1} parent=11 // pred_fallthru
        _
    $region12: #{se_layer.1} parent=5 // pred_fallthru
      _
    %p174 = scmp.lt.s32.totalorder %s11, 2
    // Predicated region
    $region29: #{se_layer.1} parent=5 // pred_check
      %p175 = pneg %p174
    $region30: #{se_layer.1} parent=5 // pred_check_branch
      %177 = sbr.rel (%p175) target = $region32
    $region31: #{se_layer.1} parent=5 // pred_region
      // Predicated region
      $region33: #{se_layer.1} parent=31 // pred_check
        %p178 = pneg %p31
      $region34: #{se_layer.1} parent=31 // pred_check_branch
        %180 = sbr.rel (%p178) target = $region36
      $region35: #{se_layer.1} parent=31 // pred_region
        %p181 = scmp.lt.s32.totalorder %s11, 1
        %s182 = scalar_select %p181, %s11, 1
        %s183 = smul.addr %s182, 2
        %s184 = smul.addr %s183, 4
        %s185 = scalar_lea.vmem %s0, %s184
      $region36: #{se_layer.1} parent=31 // pred_fallthru
        _
    $region32: #{se_layer.1} parent=5 // pred_fallthru
      _
    %p186 = scmp.le.s32.totalorder 1, %s11
    %p187 = scmp.lt.s32.totalorder %s11, 3
    %p188 = pnand %p186, %p187
    %p189 = pneg %p188
    // Predicated region
    $region37: #{se_layer.1} parent=5 // pred_check
      _
    $region38: #{se_layer.1} parent=5 // pred_check_branch
      %191 = sbr.rel (%p188) target = $region40
    $region39: #{se_layer.1} parent=5 // pred_region
      %s192 = ssub.s32 %s11, 1
      %p193 = scmp.lt.s32.totalorder %s16, 1
      %s194 = scalar_select %p193, %s16, 1
      %s195 = smul.addr %s194, 2
      %s196 = smul.addr %s195, 4
      %s197 = scalar_lea.vmem %s0, %s196
      %p198 = pneg %p37
      %p199 = pneg %p34
      %p200 = pneg %p58
      %p201 = pneg %p55
      %p202 = pneg %p79
      %p203 = pneg %p76
      %p204 = pneg %p100
      %p205 = pneg %p97
      %p206 = pneg %p121
      %p207 = pneg %p118
      %p208 = pneg %p147
      %p209 = pneg %p144
      %p210 = scmp.lt.s32.totalorder %s16, 1
      %s211 = scalar_select %p210, %s16, 1
      %s212 = smul.addr %s211, 2
      %s213 = smul.addr %s212, 4
      %s214 = scalar_lea.vmem %s5, %s213
      %p215 = scmp.lt.s32.totalorder %s16, 1
      %s216 = scalar_select %p215, %s16, 1
      %s217 = smul.addr %s216, 2
      %s218 = smul.addr %s217, 4
      %s219 = scalar_lea.vmem %s0, %s218
      %p220 = scmp.lt.s32.totalorder %s16, 1
      %s221 = scalar_select %p220, %s16, 1
      %s222 = smul.addr %s221, 2
      %s223 = smul.addr %s222, 4
      %s224 = scalar_lea.vmem %s5, %s223
      %v225 = vld [vmem:[%s219] sm:$0xff]
      %227 = vst [vmem:[#allocation1] ss:$2 sm:$0xff] %v225
      %v228 = vld.sshfl [vmem:[#allocation1] sm:$0xff pattern:$0x75316420]
      %v229 = vld.sshfl [vmem:[#allocation1 + $0x8] sm:$0xff pattern:$0x75316420]
      %vm232 = vcmask 1043456
      %v233 = vsel %vm232, %v228, 0.0
      %v234 = vsel %vm232, %v229, 0.0
      %v235 = vadd.f32 %v233, %v234
      %236 = vadd.xlane.f32.xlu0 %v235
      %v237 = vpop.xlane.xlu0 %236
      %v238 = vmul.f32 %v237, 0.00390625
      %v239 = vld [vmem:[%s1] sm:$0xf]
      %v240 = vmul.f32 %v239, %v238
      %vm241 = vcmask 60416
      %v242 = vsel %vm241, %v240, 0.0
      %v243 = vrot.slane %v242, 4
      %v244 = vadd.f32 %v242, %v243
      %v245 = vrot.slane %v244, 2
      %v246 = vadd.f32 %v244, %v245
      %v247 = vrot.slane %v246, 1
      %v248 = vadd.f32 %v246, %v247
      %v249 = vld [vmem:[%s2] sm:$0x1]
      %v250 = vadd.f32 %v248, %v249
      %v251 = vmax.f32 %v250, 0.0
      %v252 = vld [vmem:[%s3] sm:$0xf]
      %v253 = vperm.slane %v251, 0
      %v254 = vmul.f32 %v252, %v253
      %v255 = vsel %vm241, %v254, 0.0
      %256 = vadd.xlane.f32.xlu0 %v255
      %v257 = vpop.xlane.xlu0 %256
      %v258 = vld [vmem:[%s4] sm:$0xf]
      %v259 = vadd.f32 %v257, %v258
      %v260 = vadd.f32 %v259, 3.0
      %v261 = vmax.f32 %v260, 0.0
      %v262 = vmin.f32 %v261, 6.0
      %v263 = vmul.f32 %v262, 0.16666667
      %265 = vset.pattern.permute.xlu0 0
      %266 = vperm.xlu0 %265, %v263
      %v267 = vpop.permute.xlu0 %266
      %v269 = vunpack.c.l.s4 839922192
      %v270 = vunpack.c.0.s8 %v269
      %v271 = vperm.slane %v267, %v270
      %v273 = vmul.f32 %v225, %v271
      %274 = vst [vmem:[%s224] sm:$0xff] %v273
      %p275 = scmp.lt.s32.totalorder %s16, 1
      %s276 = scalar_select %p275, %s16, 1
      %s277 = smul.addr %s276, 2
      %s278 = smul.addr %s277, 4
      %s279 = scalar_lea.vmem %s5, %s278
      // Predicated region
      $region41: #{se_layer.1} parent=39 // pred_check
        %p280 = pneg %p144
      $region42: #{se_layer.1} parent=39 // pred_check_branch
        %282 = sbr.rel (%p280) target = $region44
      $region43: #{se_layer.1} parent=39 // pred_region
        _
      $region44: #{se_layer.1} parent=39 // pred_fallthru
        _
    $region40: #{se_layer.1} parent=5 // pred_fallthru
      _
    %p283 = scmp.le.s32.totalorder 2, %s11
    // Predicated region
    $region45: #{se_layer.1} parent=5 // pred_check
      %p284 = pneg %p283
    $region46: #{se_layer.1} parent=5 // pred_check_branch
      %286 = sbr.rel (%p284) target = $region48
    $region47: #{se_layer.1} parent=5 // pred_region
      %s287 = ssub.s32 %s11, 2
      // Predicated region
      $region49: #{se_layer.1} parent=47 // pred_check
        %p288 = pneg %p150
      $region50: #{se_layer.1} parent=47 // pred_check_branch
        %290 = sbr.rel (%p288) target = $region52
      $region51: #{se_layer.1} parent=47 // pred_region
        %p291 = scmp.lt.s32.totalorder %s17, 1
        %s292 = scalar_select %p291, %s17, 1
        %s293 = smul.addr %s292, 2
        %s294 = smul.addr %s293, 4
        %s295 = scalar_lea.vmem %s5, %s294
      $region52: #{se_layer.1} parent=47 // pred_fallthru
        _
    $region48: #{se_layer.1} parent=5 // pred_fallthru
      _
  $region6: #{se_layer.1} parent=0 // loop_footer
    %s15 = sadd.s32 1, %s11
  $region7: #{se_layer.1} parent=0 // loop_footer_branch
    %10 = sbr.rel target = $region3
  $region8: #{se_layer.1} parent=0 // loop_exit
    _

</llo_original>
